<compile_context>
chip_gen: v6e
topology: v6e:2x2x1
jax: 0.10.0
libtpu: 0.0.40
codegen_flags: <defaults>
</compile_context>

<pallas_src>
import jax
import jax.numpy as jnp
from jax import lax
from jax.experimental import pallas as pl
from jax.experimental.pallas import tpu as pltpu


def _round_up(x: int, m: int) -> int:
    return (x + m - 1) // m * m


def _largest_div_tile(dim: int, target: int, unit: int = 128):
    """Largest multiple of `unit` that divides `dim` and is <= target.

    Returns None if `dim` is not a multiple of `unit` (caller falls back to
    padding)."""
    if dim % unit != 0:
        return None
    m = dim // unit
    cap = max(1, min(target // unit, m))
    for d in range(cap, 0, -1):
        if m % d == 0:
            return d * unit
    return unit


def _make_kernel(stream_mask: bool, use_scale: bool, use_bias: bool, acc_in_out: bool):
    """Build the tiled kernel; static flags decide which refs exist."""

    def kernel(*refs):
        it = iter(refs)
        x_ref = next(it)                               # (tm, tk)
        w_ref = next(it)                               # (tn, tk)  PyTorch (out, in) layout
        mask_ref = next(it) if stream_mask else None   # (tn, tk) int8
        scale_ref = next(it) if use_scale else None    # (1, tn)  mask_dp row
        bias_ref = next(it) if use_bias else None      # (1, tn)  pre-folded bias row
        o_ref = next(it)                               # (tm, tn)
        # f32 accumulator: either the (f32) output block itself, or a scratch tile.
        acc_ref = o_ref if acc_in_out else next(it)

        k = pl.program_id(2)

        @pl.when(k == 0)
        def _init():
            acc_ref[...] = jnp.zeros_like(acc_ref)

        w = w_ref[...]
        if stream_mask:
            # Binary mask via select (no int8->bf16 cast + multiply); mask_dp is
            # applied later as a (1, tn) post-scale of the accumulator.
            w = jnp.where(mask_ref[...] != 0, w, jnp.zeros_like(w))

        # x (tm, tk) contracted with w (tn, tk) over K (last dim of both) -> (tm, tn).
        # No transpose of the weight tile is materialized.
        acc_ref[...] += lax.dot_general(
            x_ref[...], w,
            dimension_numbers=(((1,), (1,)), ((), ())),
            preferred_element_type=jnp.float32,
        )

        if use_scale or use_bias or not acc_in_out:
            @pl.when(k == pl.num_programs(2) - 1)
            def _finish():
                out = acc_ref[...]
                if use_scale:
                    out = out * scale_ref[...]          # (1, tn) broadcasts over rows
                if use_bias:
                    out = out + bias_ref[...]
                o_ref[...] = out.astype(o_ref.dtype)

    return kernel


def dense_linear_forward(x, weight, mask, mask_dp, bias, bias_mask, *,
                         use_mask: bool, use_bias: bool,
                         tm: int = 512, tn: int = 512, tk: int = 1024,
                         compute_dtype=jnp.bfloat16, out_dtype=None,
                         prefold_mask: bool = False):
    """DenseLinear.forward as a tiled Pallas TPU kernel.

    x:         (B, in_features)
    weight:    (out_features, in_features)     (PyTorch layout)
    mask:      (out_features, in_features)     bool / 0-1
    mask_dp:   (out_features, 1)
    bias:      (out_features,)
    bias_mask: (out_features,)                 bool / 0-1
    compute_dtype: streaming dtype for x/weight (default bf16; accumulation f32).
    out_dtype:     defaults to the ORIGINAL x dtype (usually f32), not compute_dtype.
    prefold_mask:  fold the binary mask into the weight once in HBM (use when the
                   weight/mask are reused across many calls).
    """
    B, K = x.shape
    N, K2 = weight.shape
    assert K == K2

    # Output dtype defaults to the *original* input dtype (before any bf16 cast).
    out_dtype = out_dtype or x.dtype
    f32 = jnp.float32

    if compute_dtype is not None:
        x = x.astype(compute_dtype)
        weight = weight.astype(compute_dtype)

    stream_mask = bool(use_mask and not prefold_mask)
    if use_mask and prefold_mask:
        # One-time fold in HBM; over weight reuse this is strictly cheaper than
        # streaming the int8 mask and doing the per-tile select.
        weight = weight * mask.astype(weight.dtype)

    # ---- Tile selection -----------------------------------------------------
    # K: prefer a divisor of K (no padding of the big operands); fall back to pad.
    tk_e = _largest_div_tile(K, tk)
    if tk_e is None:
        tk_e = min(tk, _round_up(K, 128))
    Kp = _round_up(K, tk_e)

    # N: same strategy.
    tn_e = _largest_div_tile(N, tn)
    if tn_e is None:
        tn_e = min(tn, _round_up(N, 128))
    Np = _round_up(N, tn_e)

    # M: cover the batch in as few tiles as possible -- every extra M tile
    # re-streams the whole weight+mask from HBM.
    tm_e = min(tm, _round_up(B, 8))
    Mp = _round_up(B, tm_e)

    # v7x megacore: guarantee >= 2 blocks on a parallel axis so both TensorCores
    # get work when B fits in one M tile and N in one N tile.
    if Mp // tm_e == 1 and Np // tn_e == 1 and Np >= 256:
        half = _largest_div_tile(Np, max(128, (Np // 2 // 128) * 128))
        if half is not None and half < tn_e:
            tn_e = half  # still divides Np, so Np is unchanged

    # ---- Padding (fallback only; cheap x always, big weight/mask only if needed)
    xp = x
    if Mp != B or Kp != K:
        xp = jnp.pad(x, ((0, Mp - B), (0, Kp - K)))
    wp = weight
    if Np != N or Kp != K:
        wp = jnp.pad(weight, ((0, Np - N), (0, Kp - K)))

    operands = [xp, wp]
    in_specs = [
        pl.BlockSpec((tm_e, tk_e), lambda i, j, k: (i, k)),   # x
        pl.BlockSpec((tn_e, tk_e), lambda i, j, k: (j, k)),   # weight
    ]

    if stream_mask:
        # int8 mask stream (4x smaller than f32), applied as a select in-kernel.
        mask_i8 = mask.astype(jnp.int8)
        if Np != N or Kp != K:
            mask_i8 = jnp.pad(mask_i8, ((0, Np - N), (0, Kp - K)))
        operands.append(mask_i8)
        in_specs.append(pl.BlockSpec((tn_e, tk_e), lambda i, j, k: (j, k)))

    if use_mask:
        # mask_dp factored out of the (N,K) product -> (1, N) accumulator post-scale.
        scale_row = mask_dp.astype(f32).reshape(1, N)
        scale_row = jnp.pad(scale_row, ((0, 0), (0, Np - N)))
        operands.append(scale_row)
        in_specs.append(pl.BlockSpec((1, tn_e), lambda i, j, k: (0, j)))

    if use_bias:
        # bias * bias_mask * mask_dp.squeeze() folded into ONE (1, N) row
        # (bias masking is NOT gated on use_mask, matching the PyTorch module).
        bias_row = (bias.astype(f32) * bias_mask.astype(f32)
                    * jnp.squeeze(mask_dp).astype(f32)).reshape(1, N)
        bias_row = jnp.pad(bias_row, ((0, 0), (0, Np - N)))
        operands.append(bias_row)
        in_specs.append(pl.BlockSpec((1, tn_e), lambda i, j, k: (0, j)))

    # f32 outputs accumulate directly in the output block; otherwise f32 scratch.
    acc_in_out = (jnp.dtype(out_dtype) == jnp.dtype(jnp.float32))
    scratch_shapes = [] if acc_in_out else [pltpu.VMEM((tm_e, tn_e), jnp.float32)]

    grid = (Mp // tm_e, Np // tn_e, Kp // tk_e)
    kernel = _make_kernel(stream_mask, use_mask, use_bias, acc_in_out)

    # ---- VMEM budget + cost hint -------------------------------------------
    x_b = jnp.dtype(xp.dtype).itemsize
    w_b = jnp.dtype(wp.dtype).itemsize
    o_b = jnp.dtype(out_dtype).itemsize
    vmem_est = 2 * (tm_e * tk_e * x_b + tn_e * tk_e * w_b
                    + (tn_e * tk_e if stream_mask else 0)
                    + (tn_e * 4 if use_mask else 0)
                    + (tn_e * 4 if use_bias else 0)
                    + tm_e * tn_e * o_b)
    if not acc_in_out:
        vmem_est += tm_e * tn_e * 4
    vmem_limit = int(min(max(vmem_est * 3 // 2, 32 * 1024 * 1024), 48 * 1024 * 1024))

    cost = pl.CostEstimate(
        flops=2 * B * N * K,
        transcendentals=0,
        bytes_accessed=(B * K * x_b + N * K * w_b
                        + (N * K if stream_mask else 0)
                        + B * N * o_b),
    )

    out = pl.pallas_call(
        kernel,
        out_shape=jax.ShapeDtypeStruct((Mp, Np), out_dtype),
        grid_spec=pltpu.PrefetchScalarGridSpec(
            num_scalar_prefetch=0,
            grid=grid,
            in_specs=in_specs,
            out_specs=pl.BlockSpec((tm_e, tn_e), lambda i, j, k: (i, j)),
            scratch_shapes=scratch_shapes,
        ),
        compiler_params=pltpu.CompilerParams(
            dimension_semantics=("parallel", "parallel", "arbitrary"),
            vmem_limit_bytes=vmem_limit,
        ),
        cost_estimate=cost,
    )(*operands)

    if Mp != B or Np != N:
        out = out[:B, :N]
    return out


def init_dense_linear_params(key, in_features, out_features):
    """Matches DenseLinear.reset_parameters(): U(-1/sqrt(fan_in), 1/sqrt(fan_in))."""
    kw, kb = jax.random.split(key)
    bound = 1.0 / (in_features ** 0.5)
    weight = jax.random.uniform(kw, (out_features, in_features),
                                minval=-bound, maxval=bound, dtype=jnp.float32)
    bias = jax.random.uniform(kb, (out_features,),
                              minval=-bound, maxval=bound, dtype=jnp.float32)
    mask = jnp.ones((out_features, in_features), dtype=jnp.float32)
    bias_mask = jnp.ones((out_features,), dtype=jnp.float32)
    mask_dp = jnp.ones((out_features, 1), dtype=jnp.float32)
    return weight, bias, mask, bias_mask, mask_dp


if __name__ == "__main__":
    keys = jax.random.split(jax.random.PRNGKey(0), 12)

    # --- Cases 1/2/4: small non-128-aligned layer (padding fallback, K loop,
    #     megacore N split, both accumulator paths). ---
    B, IN, OUT = 8, 200, 300
    x = jax.random.normal(keys[0], (B, IN), dtype=jnp.float32)
    weight, bias, mask, bias_mask, mask_dp = init_dense_linear_params(keys[1], IN, OUT)
    mask = (jax.random.uniform(keys[2], mask.shape) > 0.3).astype(jnp.float32)
    bias_mask = (jax.random.uniform(keys[3], bias_mask.shape) > 0.2).astype(jnp.float32)
    mask_dp = 1.0 + jax.random.uniform(keys[4], mask_dp.shape, dtype=jnp.float32)

    b_ref = bias * bias_mask * jnp.squeeze(mask_dp)
    ref1 = jnp.dot(x, (weight * mask * mask_dp).T, precision=lax.Precision.HIGHEST) + b_ref
    ref2 = jnp.dot(x, weight.T, precision=lax.Precision.HIGHEST) + b_ref

    # Case 1: masked + bias, streamed int8 mask, small tiles -> grid (1, 3, 2).
    out1 = dense_linear_forward(x, weight, mask, mask_dp, bias, bias_mask,
                                use_mask=True, use_bias=True,
                                tm=128, tn=128, tk=128)
    out1 = jax.block_until_ready(out1)
    assert out1.shape == (B, OUT) and out1.dtype == jnp.float32
    assert jnp.allclose(out1, ref1, atol=5e-2, rtol=5e-2), "mismatch (masked path)"

    # Case 2: unmasked weight + masked bias (as in the module), default big tiles.
    out2 = dense_linear_forward(x, weight, mask, mask_dp, bias, bias_mask,
                                use_mask=False, use_bias=True)
    out2 = jax.block_until_ready(out2)
    assert out2.shape == (B, OUT)
    assert jnp.allclose(out2, ref2, atol=5e-2, rtol=5e-2), "mismatch (unmasked path)"

    # Case 3: 128-aligned layer -> divisor tiles (no weight padding), mask
    # pre-folded into the weight (serving path), scratch-free f32 accumulation.
    B3, IN3, OUT3 = 16, 256, 512
    x3 = jax.random.normal(keys[5], (B3, IN3), dtype=jnp.float32)
    w3, b3, m3, bm3, dp3 = init_dense_linear_params(keys[6], IN3, OUT3)
    m3 = (jax.random.uniform(keys[7], m3.shape) > 0.5).astype(jnp.float32)
    bm3 = (jax.random.uniform(keys[8], bm3.shape) > 0.5).astype(jnp.float32)
    dp3 = 1.0 + jax.random.uniform(keys[9], dp3.shape, dtype=jnp.float32)
    ref3 = (jnp.dot(x3, (w3 * m3 * dp3).T, precision=lax.Precision.HIGHEST)
            + b3 * bm3 * jnp.squeeze(dp3))
    out3 = dense_linear_forward(x3, w3, m3, dp3, b3, bm3,
                                use_mask=True, use_bias=True,
                                tk=128, prefold_mask=True)
    out3 = jax.block_until_ready(out3)
    assert out3.shape == (B3, OUT3)
    assert jnp.allclose(out3, ref3, atol=5e-2, rtol=5e-2), "mismatch (prefold path)"

    # Case 4: bf16 output -> exercises the f32 VMEM scratch accumulator path.
    out4 = dense_linear_forward(x, weight, mask, mask_dp, bias, bias_mask,
                                use_mask=True, use_bias=True,
                                tm=128, tn=128, tk=128,
                                out_dtype=jnp.bfloat16)
    out4 = jax.block_until_ready(out4)
    assert out4.shape == (B, OUT) and out4.dtype == jnp.bfloat16
    assert jnp.allclose(out4.astype(jnp.float32), ref1, atol=8e-2, rtol=8e-2), \
        "mismatch (bf16-out path)"

    print("KERNEL_OK")
</pallas_src>

<mosaic_0001>
module attributes {stable_mosaic.version = 11 : i64} {
  func.func @kernel(%arg0: i32, %arg1: i32, %arg2: i32, %arg3: memref<8x128xbf16, #tpu.memory_space<vmem>>, %arg4: memref<128x128xbf16, #tpu.memory_space<vmem>>, %arg5: memref<128x128xi8, #tpu.memory_space<vmem>>, %arg6: memref<1x128xf32, #tpu.memory_space<vmem>>, %arg7: memref<1x128xf32, #tpu.memory_space<vmem>>, %arg8: memref<8x128xf32, #tpu.memory_space<vmem>>) attributes {dimension_semantics = [#tpu.dimension_semantics<parallel>, #tpu.dimension_semantics<parallel>, #tpu.dimension_semantics<arbitrary>], iteration_bounds = array<i64: 1, 3, 2>, scalar_prefetch = 0 : i64, scratch_operands = 0 : i64, tpu.core_type = #tpu.core_type<tc>, window_params = [{transform_indices = @transform_0, window_bounds = array<i64: 8, 128>}, {transform_indices = @transform_1, window_bounds = array<i64: 128, 128>}, {transform_indices = @transform_2, window_bounds = array<i64: 128, 128>}, {transform_indices = @transform_3, window_bounds = array<i64: 1, 128>}, {transform_indices = @transform_4, window_bounds = array<i64: 1, 128>}, {transform_indices = @transform_5, window_bounds = array<i64: 8, 128>}]} {
    %c0_i32 = arith.constant 0 : i32
    %0 = arith.cmpi eq, %arg2, %c0_i32 : i32
    %1 = arith.extui %0 : i1 to i32
    %c0_i32_0 = arith.constant 0 : i32
    %2 = arith.cmpi ne, %1, %c0_i32_0 : i32
    scf.if %2 {
      %cst_12 = arith.constant 0.000000e+00 : f32
      %17 = vector.broadcast %cst_12 : f32 to vector<8x128xf32>
      %c0_13 = arith.constant 0 : index
      %c0_14 = arith.constant 0 : index
      %18 = vector.load %arg8[%c0_13, %c0_14] : memref<8x128xf32, #tpu.memory_space<vmem>>, vector<8x128xf32>
      tpu.vector_store %arg8[%c0_13, %c0_14], %17 {strides = array<i32>} : memref<8x128xf32, #tpu.memory_space<vmem>>, vector<8x128xf32>,
    } else {
    }
    %c0 = arith.constant 0 : index
    %c0_1 = arith.constant 0 : index
    %3 = vector.load %arg4[%c0, %c0_1] : memref<128x128xbf16, #tpu.memory_space<vmem>>, vector<128x128xbf16>
    %c0_2 = arith.constant 0 : index
    %c0_3 = arith.constant 0 : index
    %4 = vector.load %arg5[%c0_2, %c0_3] : memref<128x128xi8, #tpu.memory_space<vmem>>, vector<128x128xi8>
    %c0_i8 = arith.constant 0 : i8
    %5 = vector.broadcast %c0_i8 : i8 to vector<128x128xi8>
    %6 = arith.cmpi ne, %4, %5 : vector<128x128xi8>
    %cst = arith.constant 0.000000e+00 : bf16
    %7 = vector.broadcast %cst : bf16 to vector<128x128xbf16>
    %8 = arith.select %6, %3, %7 : vector<128x128xi1>, vector<128x128xbf16>
    %c0_4 = arith.constant 0 : index
    %c0_5 = arith.constant 0 : index
    %9 = vector.load %arg8[%c0_4, %c0_5] : memref<8x128xf32, #tpu.memory_space<vmem>>, vector<8x128xf32>
    %c0_6 = arith.constant 0 : index
    %c0_7 = arith.constant 0 : index
    %10 = vector.load %arg3[%c0_6, %c0_7] : memref<8x128xbf16, #tpu.memory_space<vmem>>, vector<8x128xbf16>
    %cst_8 = arith.constant dense<0.000000e+00> : vector<8x128xf32>
    %11 = tpu.matmul %10, %8, %cst_8 {dimension_numbers = #tpu.dot_dimension_numbers<[1], [1], [0], [0], [0, 0, 1, 0], [], []>} : vector<8x128xbf16>, vector<128x128xbf16>, vector<8x128xf32> -> vector<8x128xf32>
    %12 = arith.addf %9, %11 : vector<8x128xf32>
    %c0_9 = arith.constant 0 : index
    %c0_10 = arith.constant 0 : index
    %13 = vector.load %arg8[%c0_9, %c0_10] : memref<8x128xf32, #tpu.memory_space<vmem>>, vector<8x128xf32>
    tpu.vector_store %arg8[%c0_9, %c0_10], %12 {strides = array<i32>} : memref<8x128xf32, #tpu.memory_space<vmem>>, vector<8x128xf32>,
    %c1_i32 = arith.constant 1 : i32
    %14 = arith.cmpi eq, %arg2, %c1_i32 : i32
    %15 = arith.extui %14 : i1 to i32
    %c0_i32_11 = arith.constant 0 : i32
    %16 = arith.cmpi ne, %15, %c0_i32_11 : i32
    scf.if %16 {
      %c0_12 = arith.constant 0 : index
      %c0_13 = arith.constant 0 : index
      %17 = vector.load %arg8[%c0_12, %c0_13] : memref<8x128xf32, #tpu.memory_space<vmem>>, vector<8x128xf32>
      %c0_14 = arith.constant 0 : index
      %c0_15 = arith.constant 0 : index
      %18 = vector.load %arg6[%c0_14, %c0_15] : memref<1x128xf32, #tpu.memory_space<vmem>>, vector<1x128xf32>
      %19 = vector.broadcast %18 : vector<1x128xf32> to vector<8x128xf32>
      %20 = arith.mulf %17, %19 : vector<8x128xf32>
      %c0_16 = arith.constant 0 : index
      %c0_17 = arith.constant 0 : index
      %21 = vector.load %arg7[%c0_16, %c0_17] : memref<1x128xf32, #tpu.memory_space<vmem>>, vector<1x128xf32>
      %22 = vector.broadcast %21 : vector<1x128xf32> to vector<8x128xf32>
      %23 = arith.addf %20, %22 : vector<8x128xf32>
      %c0_18 = arith.constant 0 : index
      %c0_19 = arith.constant 0 : index
      %24 = vector.load %arg8[%c0_18, %c0_19] : memref<8x128xf32, #tpu.memory_space<vmem>>, vector<8x128xf32>
      tpu.vector_store %arg8[%c0_18, %c0_19], %23 {strides = array<i32>} : memref<8x128xf32, #tpu.memory_space<vmem>>, vector<8x128xf32>,
    } else {
    }
    return
  }
  func.func @transform_0(%arg0: i32, %arg1: i32, %arg2: i32) -> (i32, i32) {
    %c0_i32 = arith.constant 0 : i32
    return %arg0, %arg2 : i32, i32
  }
  func.func @transform_1(%arg0: i32, %arg1: i32, %arg2: i32) -> (i32, i32) {
    %c0_i32 = arith.constant 0 : i32
    return %arg1, %arg2 : i32, i32
  }
  func.func @transform_2(%arg0: i32, %arg1: i32, %arg2: i32) -> (i32, i32) {
    %c0_i32 = arith.constant 0 : i32
    return %arg1, %arg2 : i32, i32
  }
  func.func @transform_3(%arg0: i32, %arg1: i32, %arg2: i32) -> (i32, i32) {
    %c0_i32 = arith.constant 0 : i32
    %c0_i32_0 = arith.constant 0 : i32
    return %c0_i32, %arg1 : i32, i32
  }
  func.func @transform_4(%arg0: i32, %arg1: i32, %arg2: i32) -> (i32, i32) {
    %c0_i32 = arith.constant 0 : i32
    %c0_i32_0 = arith.constant 0 : i32
    return %c0_i32, %arg1 : i32, i32
  }
  func.func @transform_5(%arg0: i32, %arg1: i32, %arg2: i32) -> (i32, i32) {
    %c0_i32 = arith.constant 0 : i32
    return %arg0, %arg1 : i32, i32
  }
}

</mosaic_0001>

<llo_original>
// kernel: tpu_custom_call.1
$region0: #{tpu_custom_call.1}
  #allocation0 [shape = 'u32[]', space=smem, size = 0x4, offset = 0x4, fixed_abs, tag = 'smem constant byte address 0x4 - core index']
  #allocation1 [shape = 'u32[144,128]{1,0:T(1,128)}', space=vmem, size = 0x12000, scoped, tag = 'internal scratch']
  %s0 = inlined_call_operand.hbm [shape: bf16[8,256], index: 0, kind: input, shape index: {}]
  %s1 = inlined_call_operand.hbm [shape: bf16[384,256], index: 1, kind: input, shape index: {}]
  %s2 = inlined_call_operand.hbm [shape: s8[384,256], index: 2, kind: input, shape index: {}]
  %s3 = inlined_call_operand.vmem [shape: f32[1,384], index: 3, kind: input, shape index: {}]
  %s4 = inlined_call_operand.vmem [shape: f32[1,384], index: 4, kind: input, shape index: {}]
  %s5 = inlined_call_operand.hbm [shape: f32[8,384], index: 5, kind: output, shape index: {}]
  %s6 = sld [smem:[#allocation0]]
  $region73: #{tpu_custom_call.1} parent=0
    _
  %s8 = ssub.s32 1, %s6
  %s9 = scalar_select 0, %s8, %s6
  $region1: #{tpu_custom_call.1} parent=0
    #allocation2 [shape = 'u8[4096]{0}', space=vmem, size = 0x1000, scoped, tag = 'input window, operand 0']
    #allocation3 [shape = 's32[2]{0}', space=sflag, size = 0x8, scoped, tag = 'scoped memory for tpu_custom_call.1']
    #allocation4 [shape = 's32[2]{0}', space=sflag, size = 0x8, scoped, tag = 'scoped memory for tpu_custom_call.1']
    #allocation5 [shape = 'u8[65536]{0}', space=vmem, size = 0x10000, scoped, tag = 'input window, operand 1']
    #allocation6 [shape = 's32[2]{0}', space=sflag, size = 0x8, scoped, tag = 'scoped memory for tpu_custom_call.1']
    #allocation7 [shape = 'u8[32768]{0}', space=vmem, size = 0x8000, scoped, tag = 'input window, operand 2']
    #allocation8 [shape = 'u8[8192]{0}', space=vmem, size = 0x2000, scoped, tag = 'output window, operand 0']
    %10 = vsyncpa [#allocation3], 0
    %s11 = scalar_lea.sflag [#allocation3], 1
    %12 = vsyncpa %s11, 0
    %13 = vsyncpa [#allocation6], 0
    %s14 = scalar_lea.sflag [#allocation6], 1
    %15 = vsyncpa %s14, 0
    %16 = vsyncpa [#allocation4], 0
    %s17 = scalar_lea.sflag [#allocation4], 1
    %18 = vsyncpa %s17, 0
    loop: start=0, step=1, limit=8
    $region2: #{tpu_custom_call.1} parent=1 // loop_pre_header
      _
    $region3: #{tpu_custom_call.1} parent=1 // loop_header
      %s20 = sphi 0, %s24
      %p21 = scmp.ge.s32.totalorder %s20, 8
      %s27 = sphi 0, %s46
      %s28 = sphi 0, %s42
      %s29 = sphi 0, %s38
      %s30 = sphi 0, %s27
      %s31 = sphi 0, %s28
      %s32 = sphi 0, %s29
      %s33 = sphi 0, %s30
      %s34 = sphi 0, %s31
      %s35 = sphi 0, %s32
      %s51 = sphi 0, %s53
      %s54 = sphi 0, %s51
      %s55 = sphi 0, %s54
      %s71 = sphi 0, %s55
      %s79 = sphi 0, %s81
      %s82 = sphi 0, %s79
      %s83 = sphi 0, %s82
      %s99 = sphi 0, %s83
      %s107 = sphi 0, %s109
      %s110 = sphi 0, %s107
      %s111 = sphi 0, %s110
      %s127 = sphi 0, %s111
      %s133 = sphi 0, %s135
      %s136 = sphi 0, %s133
      %s137 = sphi 0, %s136
      %s153 = sphi 0, %s137
      %s159 = sphi 0, %s161
      %s162 = sphi 0, %s159
      %s163 = sphi 0, %s162
      %s179 = sphi 0, %s163
      %s187 = sphi 0, %s189
      %s190 = sphi 0, %s187
      %s191 = sphi 0, %s190
      %s207 = sphi 0, %s191
    $region4: #{tpu_custom_call.1} parent=1 // loop_header_branch
      %23 = sbr.rel (%p21) target = $region8
    $region5: #{tpu_custom_call.1} parent=1 // loop_body
      %s25 = ssub.s32 %s20, 1
      %s26 = ssub.s32 %s20, 2
      %s36 = sadd.s32 1, %s29
      %p37 = scmp.ge.s32.totalorder %s36, 2
      %s38 = scalar_select %p37, 0, %s36
      %s39 = sadd.s32 1, %s28
      %s40 = scalar_select %p37, %s39, %s28
      %p41 = scmp.ge.s32.totalorder %s40, 3
      %s42 = scalar_select %p41, 0, %s40
      %s43 = sadd.s32 1, %s27
      %s44 = scalar_select %p41, %s43, %s27
      %p45 = scmp.ge.s32.totalorder %s44, 1
      %s46 = scalar_select %p45, 0, %s44
      %s47 = ssub.s32 %s27, %s46
      %s48 = ssub.s32 %s29, %s38
      %s49 = sor.u32 %s47, %s48
      %p50 = scmp.eq.s32.totalorder %s49, 0
      %s52 = sadd.s32 %s51, 1
      %s53 = scalar_select %p50, %s51, %s52
      %p56 = pneg %p50
      %p57 = scmp.eq.s32.totalorder %s20, 5
      %p58 = por %p56, %p57
      %p59 = scmp.ne.s32.totalorder %s51, %s54
      %p60 = scmp.eq.s32.totalorder %s20, 0
      %p61 = por %p59, %p60
      %p62 = scmp.ne.s32.totalorder %s51, %s54
      %p63 = scmp.eq.s32.totalorder %s25, 5
      %p64 = por %p62, %p63
      %p65 = scmp.ne.s32.totalorder %s54, %s55
      %p66 = scmp.eq.s32.totalorder %s25, 0
      %p67 = por %p65, %p66
      %p68 = scmp.ne.s32.totalorder %s54, %s55
      %p69 = scmp.eq.s32.totalorder %s26, 5
      %p70 = por %p68, %p69
      %p72 = scmp.ne.s32.totalorder %s55, %s71
      %p73 = scmp.eq.s32.totalorder %s26, 0
      %p74 = por %p72, %p73
      %s75 = ssub.s32 %s28, %s42
      %s76 = ssub.s32 %s29, %s38
      %s77 = sor.u32 %s75, %s76
      %p78 = scmp.eq.s32.totalorder %s77, 0
      %s80 = sadd.s32 %s79, 1
      %s81 = scalar_select %p78, %s79, %s80
      %p84 = pneg %p78
      %p85 = scmp.eq.s32.totalorder %s20, 5
      %p86 = por %p84, %p85
      %p87 = scmp.ne.s32.totalorder %s79, %s82
      %p88 = scmp.eq.s32.totalorder %s20, 0
      %p89 = por %p87, %p88
      %p90 = scmp.ne.s32.totalorder %s79, %s82
      %p91 = scmp.eq.s32.totalorder %s25, 5
      %p92 = por %p90, %p91
      %p93 = scmp.ne.s32.totalorder %s82, %s83
      %p94 = scmp.eq.s32.totalorder %s25, 0
      %p95 = por %p93, %p94
      %p96 = scmp.ne.s32.totalorder %s82, %s83
      %p97 = scmp.eq.s32.totalorder %s26, 5
      %p98 = por %p96, %p97
      %p100 = scmp.ne.s32.totalorder %s83, %s99
      %p101 = scmp.eq.s32.totalorder %s26, 0
      %p102 = por %p100, %p101
      %s103 = ssub.s32 %s28, %s42
      %s104 = ssub.s32 %s29, %s38
      %s105 = sor.u32 %s103, %s104
      %p106 = scmp.eq.s32.totalorder %s105, 0
      %s108 = sadd.s32 %s107, 1
      %s109 = scalar_select %p106, %s107, %s108
      %p112 = pneg %p106
      %p113 = scmp.eq.s32.totalorder %s20, 5
      %p114 = por %p112, %p113
      %p115 = scmp.ne.s32.totalorder %s107, %s110
      %p116 = scmp.eq.s32.totalorder %s20, 0
      %p117 = por %p115, %p116
      %p118 = scmp.ne.s32.totalorder %s107, %s110
      %p119 = scmp.eq.s32.totalorder %s25, 5
      %p120 = por %p118, %p119
      %p121 = scmp.ne.s32.totalorder %s110, %s111
      %p122 = scmp.eq.s32.totalorder %s25, 0
      %p123 = por %p121, %p122
      %p124 = scmp.ne.s32.totalorder %s110, %s111
      %p125 = scmp.eq.s32.totalorder %s26, 5
      %p126 = por %p124, %p125
      %p128 = scmp.ne.s32.totalorder %s111, %s127
      %p129 = scmp.eq.s32.totalorder %s26, 0
      %p130 = por %p128, %p129
      %s131 = ssub.s32 %s28, %s42
      %p132 = scmp.eq.s32.totalorder %s131, 0
      %s134 = sadd.s32 %s133, 1
      %s135 = scalar_select %p132, %s133, %s134
      %p138 = pneg %p132
      %p139 = scmp.eq.s32.totalorder %s20, 5
      %p140 = por %p138, %p139
      %p141 = scmp.ne.s32.totalorder %s133, %s136
      %p142 = scmp.eq.s32.totalorder %s20, 0
      %p143 = por %p141, %p142
      %p144 = scmp.ne.s32.totalorder %s133, %s136
      %p145 = scmp.eq.s32.totalorder %s25, 5
      %p146 = por %p144, %p145
      %p147 = scmp.ne.s32.totalorder %s136, %s137
      %p148 = scmp.eq.s32.totalorder %s25, 0
      %p149 = por %p147, %p148
      %p150 = scmp.ne.s32.totalorder %s136, %s137
      %p151 = scmp.eq.s32.totalorder %s26, 5
      %p152 = por %p150, %p151
      %p154 = scmp.ne.s32.totalorder %s137, %s153
      %p155 = scmp.eq.s32.totalorder %s26, 0
      %p156 = por %p154, %p155
      %s157 = ssub.s32 %s28, %s42
      %p158 = scmp.eq.s32.totalorder %s157, 0
      %s160 = sadd.s32 %s159, 1
      %s161 = scalar_select %p158, %s159, %s160
      %p164 = pneg %p158
      %p165 = scmp.eq.s32.totalorder %s20, 5
      %p166 = por %p164, %p165
      %p167 = scmp.ne.s32.totalorder %s159, %s162
      %p168 = scmp.eq.s32.totalorder %s20, 0
      %p169 = por %p167, %p168
      %p170 = scmp.ne.s32.totalorder %s159, %s162
      %p171 = scmp.eq.s32.totalorder %s25, 5
      %p172 = por %p170, %p171
      %p173 = scmp.ne.s32.totalorder %s162, %s163
      %p174 = scmp.eq.s32.totalorder %s25, 0
      %p175 = por %p173, %p174
      %p176 = scmp.ne.s32.totalorder %s162, %s163
      %p177 = scmp.eq.s32.totalorder %s26, 5
      %p178 = por %p176, %p177
      %p180 = scmp.ne.s32.totalorder %s163, %s179
      %p181 = scmp.eq.s32.totalorder %s26, 0
      %p182 = por %p180, %p181
      %s183 = ssub.s32 %s27, %s46
      %s184 = ssub.s32 %s28, %s42
      %s185 = sor.u32 %s183, %s184
      %p186 = scmp.eq.s32.totalorder %s185, 0
      %s188 = sadd.s32 %s187, 1
      %s189 = scalar_select %p186, %s187, %s188
      %p192 = pneg %p186
      %p193 = scmp.eq.s32.totalorder %s20, 5
      %p194 = por %p192, %p193
      %p195 = scmp.ne.s32.totalorder %s187, %s190
      %p196 = scmp.eq.s32.totalorder %s20, 0
      %p197 = por %p195, %p196
      %p198 = scmp.ne.s32.totalorder %s187, %s190
      %p199 = scmp.eq.s32.totalorder %s25, 5
      %p200 = por %p198, %p199
      %p201 = scmp.ne.s32.totalorder %s190, %s191
      %p202 = scmp.eq.s32.totalorder %s25, 0
      %p203 = por %p201, %p202
      %p204 = scmp.ne.s32.totalorder %s190, %s191
      %p205 = scmp.eq.s32.totalorder %s26, 5
      %p206 = por %p204, %p205
      %p208 = scmp.ne.s32.totalorder %s191, %s207
      %p209 = scmp.eq.s32.totalorder %s26, 0
      %p210 = por %p208, %p209
      %p211 = scmp.le.s32.totalorder 1, %s20
      %p212 = scmp.lt.s32.totalorder %s20, 7
      %p213 = pnand %p211, %p212
      %p214 = pneg %p213
      // Predicated region
      $region9: #{tpu_custom_call.1} parent=5 // pred_check
        _
      $region10: #{tpu_custom_call.1} parent=5 // pred_check_branch
        %216 = sbr.rel (%p213) target = $region12
      $region11: #{tpu_custom_call.1} parent=5 // pred_region
        %s217 = ssub.s32 %s20, 1
      $region12: #{tpu_custom_call.1} parent=5 // pred_fallthru
        _
      %p218 = scmp.lt.s32.totalorder %s20, 6
      // Predicated region
      $region13: #{tpu_custom_call.1} parent=5 // pred_check
        %p219 = pneg %p218
      $region14: #{tpu_custom_call.1} parent=5 // pred_check_branch
        %221 = sbr.rel (%p219) target = $region16
      $region15: #{tpu_custom_call.1} parent=5 // pred_region
        // Predicated region
        $region17: #{tpu_custom_call.1} parent=15 // pred_check
          %p222 = pneg %p61
        $region18: #{tpu_custom_call.1} parent=15 // pred_check_branch
          %224 = sbr.rel (%p222) target = $region20
        $region19: #{tpu_custom_call.1} parent=15 // pred_region
          %s225 = sand.u32 %s51, 1
          %s226 = scalar_lea.sflag [#allocation3], %s225
          %s227 = sand.u32 %s51, 1
          %s228 = smul.addr %s227, 4
          %s229 = scalar_lea.vmem [#allocation2], %s228
          %s231 = ssub.s32 64, 64
          %232 = vsyncadd %s226, %s231
          %s233 = smul.addr %s27, 2
          %s234 = sadd.s32 %s29, %s233
          %s235 = smul.addr %s234, 64
          %s236 = scalar_lea.hbm %s0, %s235
          %s238 = sshll.u32 %s229, 4
          %s239 = int_to_ptr.vmem [resolvable:$true] %s238
          %241 = dma.hbm_to_vmem [thread:$0]  %s236, 64, %s239, %s226
        $region20: #{tpu_custom_call.1} parent=15 // pred_fallthru
          _
        // Predicated region
        $region21: #{tpu_custom_call.1} parent=15 // pred_check
          %p242 = pneg %p89
        $region22: #{tpu_custom_call.1} parent=15 // pred_check_branch
          %244 = sbr.rel (%p242) target = $region24
        $region23: #{tpu_custom_call.1} parent=15 // pred_region
          %s245 = sand.u32 %s20, 1
          %s246 = scalar_lea.sflag [#allocation6], %s245
          %s247 = sand.u32 %s79, 1
          %s248 = smul.addr %s247, 64
          %s249 = scalar_lea.vmem [#allocation5], %s248
          %s250 = smul.u32 16, %s28
          %s252 = ssub.s32 1024, 1024
          %253 = vsyncadd %s246, %s252
          %s254 = smul.addr %s250, 2
          %s255 = sadd.s32 %s29, %s254
          %s256 = smul.addr %s255, 64
          %s257 = scalar_lea.hbm %s1, %s256
          %s258 = sshll.u32 %s249, 4
          %s259 = int_to_ptr.vmem [resolvable:$true] %s258
          %264 = dma.hbm_to_vmem [thread:$0]  %s257, 1024, %s259, %s246, 128, 64, 4
        $region24: #{tpu_custom_call.1} parent=15 // pred_fallthru
          _
        // Predicated region
        $region25: #{tpu_custom_call.1} parent=15 // pred_check
          %p265 = pneg %p117
        $region26: #{tpu_custom_call.1} parent=15 // pred_check_branch
          %267 = sbr.rel (%p265) target = $region28
        $region27: #{tpu_custom_call.1} parent=15 // pred_region
          %s268 = sand.u32 %s20, 1
          %s269 = scalar_lea.sflag [#allocation6], %s268
          %s270 = sand.u32 %s107, 1
          %s271 = smul.addr %s270, 32
          %s272 = scalar_lea.vmem [#allocation7], %s271
          %s273 = smul.u32 4, %s28
          %s275 = ssub.s32 512, 512
          %276 = vsyncadd %s269, %s275
          %s277 = smul.addr %s273, 2
          %s278 = sadd.s32 %s29, %s277
          %s279 = smul.addr %s278, 128
          %s280 = scalar_lea.hbm %s2, %s279
          %s281 = sshll.u32 %s272, 4
          %s282 = int_to_ptr.vmem [resolvable:$true] %s281
          %287 = dma.hbm_to_vmem [thread:$0]  %s280, 512, %s282, %s269, 256, 128, 8
        $region28: #{tpu_custom_call.1} parent=15 // pred_fallthru
          _
        // Predicated region
        $region29: #{tpu_custom_call.1} parent=15 // pred_check
          %p288 = pneg %p143
        $region30: #{tpu_custom_call.1} parent=15 // pred_check_branch
          %290 = sbr.rel (%p288) target = $region32
        $region31: #{tpu_custom_call.1} parent=15 // pred_region
          %p291 = scmp.lt.s32.totalorder %s28, 2
          %s292 = scalar_select %p291, %s28, 2
          %s293 = scalar_lea.vmem %s3, %s292
        $region32: #{tpu_custom_call.1} parent=15 // pred_fallthru
          _
        // Predicated region
        $region33: #{tpu_custom_call.1} parent=15 // pred_check
          %p294 = pneg %p169
        $region34: #{tpu_custom_call.1} parent=15 // pred_check_branch
          %296 = sbr.rel (%p294) target = $region36
        $region35: #{tpu_custom_call.1} parent=15 // pred_region
          %p297 = scmp.lt.s32.totalorder %s28, 2
          %s298 = scalar_select %p297, %s28, 2
          %s299 = scalar_lea.vmem %s4, %s298
        $region36: #{tpu_custom_call.1} parent=15 // pred_fallthru
          _
      $region16: #{tpu_custom_call.1} parent=5 // pred_fallthru
        _
      %p300 = scmp.le.s32.totalorder 1, %s20
      %p301 = scmp.lt.s32.totalorder %s20, 7
      %p302 = pnand %p300, %p301
      %p303 = pneg %p302
      // Predicated region
      $region37: #{tpu_custom_call.1} parent=5 // pred_check
        _
      $region38: #{tpu_custom_call.1} parent=5 // pred_check_branch
        %305 = sbr.rel (%p302) target = $region40
      $region39: #{tpu_custom_call.1} parent=5 // pred_region
        %s306 = ssub.s32 %s20, 1
        %s307 = sand.u32 %s54, 1
        %s308 = scalar_lea.sflag [#allocation3], %s307
        %s309 = sand.u32 %s54, 1
        %s310 = smul.addr %s309, 4
        %s311 = scalar_lea.vmem [#allocation2], %s310
        // Predicated region
        $region41: #{tpu_custom_call.1} parent=39 // pred_check
          %p312 = pneg %p67
        $region42: #{tpu_custom_call.1} parent=39 // pred_check_branch
          %314 = sbr.rel (%p312) target = $region44
        $region43: #{tpu_custom_call.1} parent=39 // pred_region
          %315 = dma.done %s308, 64
        $region44: #{tpu_custom_call.1} parent=39 // pred_fallthru
          _
        %s316 = sand.u32 %s25, 1
        %s317 = scalar_lea.sflag [#allocation6], %s316
        %s318 = sand.u32 %s82, 1
        %s319 = smul.addr %s318, 64
        %s320 = scalar_lea.vmem [#allocation5], %s319
        // Predicated region
        $region45: #{tpu_custom_call.1} parent=39 // pred_check
          %p321 = pneg %p95
        $region46: #{tpu_custom_call.1} parent=39 // pred_check_branch
          %323 = sbr.rel (%p321) target = $region48
        $region47: #{tpu_custom_call.1} parent=39 // pred_region
          %324 = dma.done %s317, 1024
        $region48: #{tpu_custom_call.1} parent=39 // pred_fallthru
          _
        %s325 = sand.u32 %s25, 1
        %s326 = scalar_lea.sflag [#allocation6], %s325
        %s327 = sand.u32 %s110, 1
        %s328 = smul.addr %s327, 32
        %s329 = scalar_lea.vmem [#allocation7], %s328
        // Predicated region
        $region49: #{tpu_custom_call.1} parent=39 // pred_check
          %p330 = pneg %p123
        $region50: #{tpu_custom_call.1} parent=39 // pred_check_branch
          %332 = sbr.rel (%p330) target = $region52
        $region51: #{tpu_custom_call.1} parent=39 // pred_region
          %333 = dma.done %s326, 512
        $region52: #{tpu_custom_call.1} parent=39 // pred_fallthru
          _
        %s334 = sand.u32 %s54, 1
        %s335 = scalar_lea.sflag [#allocation3], %s334
        %s336 = sand.u32 %s54, 1
        %s337 = smul.addr %s336, 4
        %s338 = scalar_lea.vmem [#allocation2], %s337
        %p339 = pneg %p67
        %p340 = pneg %p64
        %s341 = sand.u32 %s25, 1
        %s342 = scalar_lea.sflag [#allocation6], %s341
        %s343 = sand.u32 %s82, 1
        %s344 = smul.addr %s343, 64
        %s345 = scalar_lea.vmem [#allocation5], %s344
        %p346 = pneg %p95
        %p347 = pneg %p92
        %s348 = sand.u32 %s25, 1
        %s349 = scalar_lea.sflag [#allocation6], %s348
        %s350 = sand.u32 %s110, 1
        %s351 = smul.addr %s350, 32
        %s352 = scalar_lea.vmem [#allocation7], %s351
        %p353 = pneg %p123
        %p354 = pneg %p120
        %p355 = scmp.lt.s32.totalorder %s31, 2
        %s356 = scalar_select %p355, %s31, 2
        %s357 = scalar_lea.vmem %s3, %s356
        %p358 = pneg %p149
        %p359 = pneg %p146
        %p360 = scmp.lt.s32.totalorder %s31, 2
        %s361 = scalar_select %p360, %s31, 2
        %s362 = scalar_lea.vmem %s4, %s361
        %p363 = pneg %p175
        %p364 = pneg %p172
        %p365 = pneg %p203
        %p366 = pneg %p200
        %s367 = sand.u32 %s190, 1
        %s368 = scalar_lea.sflag [#allocation4], %s367
        %s369 = sand.u32 %s190, 1
        %s370 = smul.addr %s369, 8
        %s371 = scalar_lea.vmem [#allocation8], %s370
        %s372 = smul.u32 16, %s31
        %s373 = smul.u32 4, %s31
        %p374 = scmp.lt.s32.totalorder %s31, 2
        %s375 = scalar_select %p374, %s31, 2
        %s376 = scalar_lea.vmem %s3, %s375
        %p377 = scmp.lt.s32.totalorder %s31, 2
        %s378 = scalar_select %p377, %s31, 2
        %s379 = scalar_lea.vmem %s4, %s378
        %p384 = scmp.eq.s32.totalorder %s32, 0
        // Predicated region
        $region53: #{tpu_custom_call.1} parent=39 // pred_check
          %p385 = pneg %p384
        $region54: #{tpu_custom_call.1} parent=39 // pred_check_branch
          %387 = sbr.rel (%p385) target = $region56
        $region55: #{tpu_custom_call.1} parent=39 // pred_region
          %388 = vst [vmem:[%s371] sm:$0xff] 0.0
        $region56: #{tpu_custom_call.1} parent=39 // pred_fallthru
          _
        %v389 = vld [vmem:[%s320] sm:$0xf]
        %v390 = vld [vmem:[%s320 + $0x4] sm:$0xf]
        %v391 = vld [vmem:[%s320 + $0x8] sm:$0xf]
        %v392 = vld [vmem:[%s320 + $0xc] sm:$0xf]
        %v393 = vld [vmem:[%s320 + $0x10] sm:$0xf]
        %v394 = vld [vmem:[%s320 + $0x14] sm:$0xf]
        %v395 = vld [vmem:[%s320 + $0x18] sm:$0xf]
        %v396 = vld [vmem:[%s320 + $0x1c] sm:$0xf]
        %v397 = vld [vmem:[%s320 + $0x20] sm:$0xf]
        %v398 = vld [vmem:[%s320 + $0x24] sm:$0xf]
        %v399 = vld [vmem:[%s320 + $0x28] sm:$0xf]
        %v400 = vld [vmem:[%s320 + $0x2c] sm:$0xf]
        %v401 = vld [vmem:[%s320 + $0x30] sm:$0xf]
        %v402 = vld [vmem:[%s320 + $0x34] sm:$0xf]
        %v403 = vld [vmem:[%s320 + $0x38] sm:$0xf]
        %v404 = vld [vmem:[%s320 + $0x3c] sm:$0xf]
        %v405 = vld [vmem:[%s329] sm:$0xff]
        %v406 = vld [vmem:[%s329 + $0x8] sm:$0xff]
        %v407 = vld [vmem:[%s329 + $0x10] sm:$0xff]
        %v408 = vld [vmem:[%s329 + $0x18] sm:$0xff]
        %vm409 = vnez %v405
        %vm410 = vnez %v406
        %vm411 = vnez %v407
        %vm412 = vnez %v408
        %v413 = vsel %vm409, 16843009, 0
        %v414 = vsel %vm410, 16843009, 0
        %v415 = vsel %vm411, 16843009, 0
        %v416 = vsel %vm412, 16843009, 0
        %v417 = vunpack.c.0.s8 %v413
        %v418 = vunpack.c.1.s8 %v413
        %v419 = vunpack.c.2.s8 %v413
        %v420 = vunpack.c.3.s8 %v413
        %v421 = vunpack.c.0.s8 %v414
        %v422 = vunpack.c.1.s8 %v414
        %v423 = vunpack.c.2.s8 %v414
        %v424 = vunpack.c.3.s8 %v414
        %v425 = vunpack.c.0.s8 %v415
        %v426 = vunpack.c.1.s8 %v415
        %v427 = vunpack.c.2.s8 %v415
        %v428 = vunpack.c.3.s8 %v415
        %v429 = vunpack.c.0.s8 %v416
        %v430 = vunpack.c.1.s8 %v416
        %v431 = vunpack.c.2.s8 %v416
        %v432 = vunpack.c.3.s8 %v416
        %v433 = vpack.c.b16 %v417, %v417
        %v434 = vpack.c.b8 %v433, %v433
        %v435 = vpack.c.b16 %v418, %v418
        %v436 = vpack.c.b8 %v435, %v435
        %v437 = vpack.c.b16 %v419, %v419
        %v438 = vpack.c.b8 %v437, %v437
        %v439 = vpack.c.b16 %v420, %v420
        %v440 = vpack.c.b8 %v439, %v439
        %v441 = vpack.c.b16 %v421, %v421
        %v442 = vpack.c.b8 %v441, %v441
        %v443 = vpack.c.b16 %v422, %v422
        %v444 = vpack.c.b8 %v443, %v443
        %v445 = vpack.c.b16 %v423, %v423
        %v446 = vpack.c.b8 %v445, %v445
        %v447 = vpack.c.b16 %v424, %v424
        %v448 = vpack.c.b8 %v447, %v447
        %v449 = vpack.c.b16 %v425, %v425
        %v450 = vpack.c.b8 %v449, %v449
        %v451 = vpack.c.b16 %v426, %v426
        %v452 = vpack.c.b8 %v451, %v451
        %v453 = vpack.c.b16 %v427, %v427
        %v454 = vpack.c.b8 %v453, %v453
        %v455 = vpack.c.b16 %v428, %v428
        %v456 = vpack.c.b8 %v455, %v455
        %v457 = vpack.c.b16 %v429, %v429
        %v458 = vpack.c.b8 %v457, %v457
        %v459 = vpack.c.b16 %v430, %v430
        %v460 = vpack.c.b8 %v459, %v459
        %v461 = vpack.c.b16 %v431, %v431
        %v462 = vpack.c.b8 %v461, %v461
        %v463 = vpack.c.b16 %v432, %v432
        %v464 = vpack.c.b8 %v463, %v463
        %vm465 = vnez %v434
        %vm466 = vnez %v436
        %vm467 = vnez %v438
        %vm468 = vnez %v440
        %vm469 = vnez %v442
        %vm470 = vnez %v444
        %vm471 = vnez %v446
        %vm472 = vnez %v448
        %vm473 = vnez %v450
        %vm474 = vnez %v452
        %vm475 = vnez %v454
        %vm476 = vnez %v456
        %vm477 = vnez %v458
        %vm478 = vnez %v460
        %vm479 = vnez %v462
        %vm480 = vnez %v464
        %v481 = vsel %vm465, 16843009, 0
        %v482 = vsel %vm466, 16843009, 0
        %v483 = vsel %vm467, 16843009, 0
        %v484 = vsel %vm468, 16843009, 0
        %v485 = vsel %vm469, 16843009, 0
        %v486 = vsel %vm470, 16843009, 0
        %v487 = vsel %vm471, 16843009, 0
        %v488 = vsel %vm472, 16843009, 0
        %v489 = vsel %vm473, 16843009, 0
        %v490 = vsel %vm474, 16843009, 0
        %v491 = vsel %vm475, 16843009, 0
        %v492 = vsel %vm476, 16843009, 0
        %v493 = vsel %vm477, 16843009, 0
        %v494 = vsel %vm478, 16843009, 0
        %v495 = vsel %vm479, 16843009, 0
        %v496 = vsel %vm480, 16843009, 0
        %v497 = vunpack.c.1.s8 %v481
        %v498 = vunpack.c.0.s8 %v481
        %v499 = vpack.c.b16 %v497, %v498
        %v500 = vunpack.c.1.s8 %v482
        %v501 = vunpack.c.0.s8 %v482
        %v502 = vpack.c.b16 %v500, %v501
        %v503 = vunpack.c.1.s8 %v483
        %v504 = vunpack.c.0.s8 %v483
        %v505 = vpack.c.b16 %v503, %v504
        %v506 = vunpack.c.1.s8 %v484
        %v507 = vunpack.c.0.s8 %v484
        %v508 = vpack.c.b16 %v506, %v507
        %v509 = vunpack.c.1.s8 %v485
        %v510 = vunpack.c.0.s8 %v485
        %v511 = vpack.c.b16 %v509, %v510
        %v512 = vunpack.c.1.s8 %v486
        %v513 = vunpack.c.0.s8 %v486
        %v514 = vpack.c.b16 %v512, %v513
        %v515 = vunpack.c.1.s8 %v487
        %v516 = vunpack.c.0.s8 %v487
        %v517 = vpack.c.b16 %v515, %v516
        %v518 = vunpack.c.1.s8 %v488
        %v519 = vunpack.c.0.s8 %v488
        %v520 = vpack.c.b16 %v518, %v519
        %v521 = vunpack.c.1.s8 %v489
        %v522 = vunpack.c.0.s8 %v489
        %v523 = vpack.c.b16 %v521, %v522
        %v524 = vunpack.c.1.s8 %v490
        %v525 = vunpack.c.0.s8 %v490
        %v526 = vpack.c.b16 %v524, %v525
        %v527 = vunpack.c.1.s8 %v491
        %v528 = vunpack.c.0.s8 %v491
        %v529 = vpack.c.b16 %v527, %v528
        %v530 = vunpack.c.1.s8 %v492
        %v531 = vunpack.c.0.s8 %v492
        %v532 = vpack.c.b16 %v530, %v531
        %v533 = vunpack.c.1.s8 %v493
        %v534 = vunpack.c.0.s8 %v493
        %v535 = vpack.c.b16 %v533, %v534
        %v536 = vunpack.c.1.s8 %v494
        %v537 = vunpack.c.0.s8 %v494
        %v538 = vpack.c.b16 %v536, %v537
        %v539 = vunpack.c.1.s8 %v495
        %v540 = vunpack.c.0.s8 %v495
        %v541 = vpack.c.b16 %v539, %v540
        %v542 = vunpack.c.1.s8 %v496
        %v543 = vunpack.c.0.s8 %v496
        %v544 = vpack.c.b16 %v542, %v543
        %vm545 = vcmp.ne.s16.totalorder %v499, 0
        %vm546 = vcmp.ne.s16.totalorder %v502, 0
        %vm547 = vcmp.ne.s16.totalorder %v505, 0
        %vm548 = vcmp.ne.s16.totalorder %v508, 0
        %vm549 = vcmp.ne.s16.totalorder %v511, 0
        %vm550 = vcmp.ne.s16.totalorder %v514, 0
        %vm551 = vcmp.ne.s16.totalorder %v517, 0
        %vm552 = vcmp.ne.s16.totalorder %v520, 0
        %vm553 = vcmp.ne.s16.totalorder %v523, 0
        %vm554 = vcmp.ne.s16.totalorder %v526, 0
        %vm555 = vcmp.ne.s16.totalorder %v529, 0
        %vm556 = vcmp.ne.s16.totalorder %v532, 0
        %vm557 = vcmp.ne.s16.totalorder %v535, 0
        %vm558 = vcmp.ne.s16.totalorder %v538, 0
        %vm559 = vcmp.ne.s16.totalorder %v541, 0
        %vm560 = vcmp.ne.s16.totalorder %v544, 0
        %v561 = vsel %vm545, %v389, 0
        %v562 = vsel %vm546, %v390, 0
        %v563 = vsel %vm547, %v391, 0
        %v564 = vsel %vm548, %v392, 0
        %v565 = vsel %vm549, %v393, 0
        %v566 = vsel %vm550, %v394, 0
        %v567 = vsel %vm551, %v395, 0
        %v568 = vsel %vm552, %v396, 0
        %v569 = vsel %vm553, %v397, 0
        %v570 = vsel %vm554, %v398, 0
        %v571 = vsel %vm555, %v399, 0
        %v572 = vsel %vm556, %v400, 0
        %v573 = vsel %vm557, %v401, 0
        %v574 = vsel %vm558, %v402, 0
        %v575 = vsel %vm559, %v403, 0
        %v576 = vsel %vm560, %v404, 0
        %v577 = vld [vmem:[%s371] sm:$0xff]
        %v578 = vld [vmem:[%s311] sm:$0xf]
        %v595 = vunpack.c.l.b16 %v561
        %v596 = vunpack.c.l.b16 %v562
        %v597 = vunpack.c.l.b16 %v563
        %v598 = vunpack.c.l.b16 %v564
        %v599 = vunpack.c.l.b16 %v565
        %v600 = vunpack.c.l.b16 %v566
        %v601 = vunpack.c.l.b16 %v567
        %v602 = vunpack.c.l.b16 %v568
        %v603 = vunpack.c.l.b16 %v569
        %v604 = vunpack.c.l.b16 %v570
        %v605 = vunpack.c.l.b16 %v571
        %v606 = vunpack.c.l.b16 %v572
        %v607 = vunpack.c.l.b16 %v573
        %v608 = vunpack.c.l.b16 %v574
        %v609 = vunpack.c.l.b16 %v575
        %v610 = vunpack.c.l.b16 %v576
        %v611 = vpack.c.b16 %v596, %v595
        %v612 = vpack.c.b16 %v598, %v597
        %v613 = vpack.c.b16 %v600, %v599
        %v614 = vpack.c.b16 %v602, %v601
        %v615 = vpack.c.b16 %v604, %v603
        %v616 = vpack.c.b16 %v606, %v605
        %v617 = vpack.c.b16 %v608, %v607
        %v618 = vpack.c.b16 %v610, %v609
        %627 = vmatprep.subr.bf16.mxu0 0
        %628 = vmatpush1.bf16.xpose.msra.mxu0 %v618
        %629 = vmatprep.subr.bf16.mxu0 0
        %630 = vmatpush1.bf16.xpose.msra.mxu0 %v617
        %631 = vmatprep.subr.bf16.mxu0 0
        %632 = vmatpush1.bf16.xpose.msra.mxu0 %v616
        %633 = vmatprep.subr.bf16.mxu0 0
        %634 = vmatpush1.bf16.xpose.msra.mxu0 %v615
        %635 = vmatprep.subr.bf16.mxu0 0
        %636 = vmatpush1.bf16.xpose.msra.mxu0 %v614
        %637 = vmatprep.subr.bf16.mxu0 0
        %638 = vmatpush1.bf16.xpose.msra.mxu0 %v613
        %639 = vmatprep.subr.bf16.mxu0 0
        %640 = vmatpush1.bf16.xpose.msra.mxu0 %v612
        %641 = vmatprep.subr.bf16.mxu0 0
        %642 = vmatpush1.bf16.xpose.msra.mxu0 %v611
        %643 = vmatprep.subr.bf16.mxu0 0
        %644 = vmatpush2.bf16.xpose.msra.mxu0 0
        %645 = vmatprep.subr.bf16.mxu0 0
        %646 = vmatpush2.bf16.xpose.msra.mxu0 0
        %647 = vmatprep.subr.bf16.mxu0 0
        %648 = vmatpush2.bf16.xpose.msra.mxu0 0
        %649 = vmatprep.subr.bf16.mxu0 0
        %650 = vmatpush2.bf16.xpose.msra.mxu0 0
        %651 = vmatprep.subr.bf16.mxu0 0
        %652 = vmatpush2.bf16.xpose.msra.mxu0 0
        %653 = vmatprep.subr.bf16.mxu0 0
        %654 = vmatpush2.bf16.xpose.msra.mxu0 0
        %655 = vmatprep.subr.bf16.mxu0 0
        %656 = vmatpush2.bf16.xpose.msra.mxu0 0
        %657 = vmatprep.subr.bf16.mxu0 0
        %658 = vmatpush2.bf16.xpose.msra.mxu0 0
        %659 = vmatprep.mubr.bf16.mxu0 0
        %660 = vmatmul.mubr.bf16.gmra.mxu0 %v578
        %v661 = vpop.f32.mrf.mxu0
        %v662 = vadd.f32 0.0, %v661
        %v663 = vpop.f32.mrf.mxu0
        %v664 = vpop.f32.mrf.mxu0
        %v665 = vpop.f32.mrf.mxu0
        %666 = vdwg.mxu0
        %v667 = vadd.f32 %v577, %v662
        %668 = vst [vmem:[%s371] sm:$0xff] %v667
        %p669 = scmp.eq.s32.totalorder %s32, 1
        // Predicated region
        $region57: #{tpu_custom_call.1} parent=39 // pred_check
          %p670 = pneg %p669
        $region58: #{tpu_custom_call.1} parent=39 // pred_check_branch
          %672 = sbr.rel (%p670) target = $region60
        $region59: #{tpu_custom_call.1} parent=39 // pred_region
          %v673 = vld [vmem:[%s371] sm:$0xff]
          %v674 = vld [vmem:[%s376] sm:$0x1]
          %v676 = vlaneseq
          %v677 = vshrl.u32 %v676, 7
          %v678 = vsub.s32 0, %v677
          %v679 = vrot.slane %v674, %v678
          %v681 = vmul.f32 %v673, %v679
          %v682 = vld [vmem:[%s379] sm:$0x1]
          %v684 = vlaneseq
          %v685 = vshrl.u32 %v684, 7
          %v686 = vsub.s32 0, %v685
          %v687 = vrot.slane %v682, %v686
          %v689 = vadd.f32 %v681, %v687
          %690 = vst [vmem:[%s371] sm:$0xff] %v689
        $region60: #{tpu_custom_call.1} parent=39 // pred_fallthru
          _
        %s691 = sand.u32 %s190, 1
        %s692 = scalar_lea.sflag [#allocation4], %s691
        %s693 = sand.u32 %s190, 1
        %s694 = smul.addr %s693, 8
        %s695 = scalar_lea.vmem [#allocation8], %s694
        // Predicated region
        $region61: #{tpu_custom_call.1} parent=39 // pred_check
          %p696 = pneg %p200
        $region62: #{tpu_custom_call.1} parent=39 // pred_check_branch
          %698 = sbr.rel (%p696) target = $region64
        $region63: #{tpu_custom_call.1} parent=39 // pred_region
          %s700 = ssub.s32 128, 128
          %701 = vsyncadd %s692, %s700
          %s702 = smul.addr %s30, 3
          %s703 = sadd.s32 %s31, %s702
          %s704 = smul.addr %s703, 128
          %s705 = scalar_lea.hbm %s5, %s704
          %s707 = sshll.u32 %s695, 4
          %s708 = int_to_ptr.vmem [resolvable:$true] %s707
          %710 = dma.vmem_to_hbm [thread:$0]  %s708, 128, %s705, %s692
        $region64: #{tpu_custom_call.1} parent=39 // pred_fallthru
          _
      $region40: #{tpu_custom_call.1} parent=5 // pred_fallthru
        _
      %p711 = scmp.le.s32.totalorder 2, %s20
      // Predicated region
      $region65: #{tpu_custom_call.1} parent=5 // pred_check
        %p712 = pneg %p711
      $region66: #{tpu_custom_call.1} parent=5 // pred_check_branch
        %714 = sbr.rel (%p712) target = $region68
      $region67: #{tpu_custom_call.1} parent=5 // pred_region
        %s715 = ssub.s32 %s20, 2
        // Predicated region
        $region69: #{tpu_custom_call.1} parent=67 // pred_check
          %p716 = pneg %p206
        $region70: #{tpu_custom_call.1} parent=67 // pred_check_branch
          %718 = sbr.rel (%p716) target = $region72
        $region71: #{tpu_custom_call.1} parent=67 // pred_region
          %s719 = sand.u32 %s191, 1
          %s720 = scalar_lea.sflag [#allocation4], %s719
          %s721 = sand.u32 %s191, 1
          %s722 = smul.addr %s721, 8
          %s723 = scalar_lea.vmem [#allocation8], %s722
          %724 = dma.done %s720, 128
        $region72: #{tpu_custom_call.1} parent=67 // pred_fallthru
          _
      $region68: #{tpu_custom_call.1} parent=5 // pred_fallthru
        _
    $region6: #{tpu_custom_call.1} parent=1 // loop_footer
      %s24 = sadd.s32 1, %s20
    $region7: #{tpu_custom_call.1} parent=1 // loop_footer_branch
      %19 = sbr.rel target = $region3
    $region8: #{tpu_custom_call.1} parent=1 // loop_exit
      _
    %725 = vsyncpa [#allocation3], 1
    %s726 = scalar_lea.sflag [#allocation3], 1
    %727 = vsyncpa %s726, 1
    %728 = vsyncpa [#allocation6], 1
    %s729 = scalar_lea.sflag [#allocation6], 1
    %730 = vsyncpa %s729, 1
    %731 = vsyncpa [#allocation4], 1
    %s732 = scalar_lea.sflag [#allocation4], 1
    %733 = vsyncpa %s732, 1

</llo_original>
